<compile_context>
chip_gen: v7x
topology: tpu7x:2x2x1
jax: 0.10.0
libtpu: 0.0.40
codegen_flags: <defaults>
</compile_context>

<pallas_src>
import numpy as np
import jax
import jax.numpy as jnp
from jax import lax
from jax.experimental import pallas as pl
from jax.experimental.pallas import tpu as pltpu


def reslin_kernel(x_ref, w1_ref, b1_ref, w2_ref, b2_ref, o_ref):
    # x_ref : (TM, Np)  input tile in its original dtype (typically f32)
    # w1_ref: (Np, Np)  first weight, pre-transposed to (in, out), compute dtype
    # b1_ref: (1,  Np)  f32
    # w2_ref: (Np, Np)  second weight, (in, out), compute dtype
    # b2_ref: (1,  Np)  f32
    cdt = w1_ref.dtype

    # h = tanh(x @ W1 + b1): compute-dtype MXU operands, f32 accumulation,
    # f32 bias add + EUP tanh.  The bf16 cast is a VPU op hidden under MXU/DMA.
    h = jnp.dot(x_ref[...].astype(cdt), w1_ref[...],
                preferred_element_type=jnp.float32)
    h = jnp.tanh(h + b1_ref[...])

    # y = h @ W2 + b2
    y = jnp.dot(h.astype(cdt), w2_ref[...],
                preferred_element_type=jnp.float32)
    y = y + b2_ref[...]

    # Residual + final tanh in f32.  Re-read x_ref here (cheap vld from the
    # already-resident VMEM tile) instead of holding the first load live
    # across both matmuls.
    o_ref[...] = jnp.tanh(x_ref[...].astype(jnp.float32) + y).astype(o_ref.dtype)


def prepare_reslin_params(w1, b1, w2, b2, *, compute_dtype=jnp.bfloat16, lane=128):
    """One-time parameter prep (outside the hot path).

    * Zero-pads the feature axis to a multiple of `lane` (128 default; use 256
      on v6e/v7x only when the deployed size is MXU-bound).  Padding is exact:
      padded weight rows/cols and biases are 0 and tanh(0)=0, so padded lanes
      stay 0 and are sliced off outside the kernel.
    * Pre-transposes PyTorch (out, in) weights to MXU-native (in, out) so the
      kernel uses a plain (M,K)x(K,N) dot.
    * Casts weights to the MXU compute dtype; biases stay f32 (added to the
      f32 accumulator).
    """
    n = w1.shape[0]
    assert w1.shape == (n, n) and w2.shape == (n, n)
    assert b1.shape == (n,) and b2.shape == (n,)
    n_pad = ((n + lane - 1) // lane) * lane
    pad = n_pad - n
    w1p = jnp.pad(jnp.asarray(w1, jnp.float32), ((0, pad), (0, pad))).T.astype(compute_dtype)
    w2p = jnp.pad(jnp.asarray(w2, jnp.float32), ((0, pad), (0, pad))).T.astype(compute_dtype)
    b1p = jnp.pad(jnp.asarray(b1, jnp.float32), (0, pad)).reshape(1, n_pad)
    b2p = jnp.pad(jnp.asarray(b2, jnp.float32), (0, pad)).reshape(1, n_pad)
    return {"w1": w1p, "b1": b1p, "w2": w2p, "b2": b2p,
            "n": n, "n_pad": n_pad, "compute_dtype": compute_dtype}


def _pick_tm(batch, target_steps=8):
    """Row-tile policy: >= target_steps grid steps when the batch allows (DMA
    overlap + dual-TC sharding), while keeping tm >= 64 so the ~0.35 us/step
    overhead stays amortized.  Small batches use a single sublane-aligned tile."""
    if batch <= 8:
        return 8
    if batch <= 64:
        return ((batch + 7) // 8) * 8          # one small tile
    for cand in (512, 256, 128, 64):
        if pl.cdiv(batch, cand) >= target_steps:
            return cand
    return 64                                   # mid-size batch: most steps at tm=64


def reslin_forward(x, params, *, tm=None, out_dtype=None):
    """x: (B, N) — applies the prepared ResLin parameters."""
    b, n = x.shape
    assert n == params["n"], "feature size mismatch with prepared params"
    n_pad = params["n_pad"]
    out_dtype = x.dtype if out_dtype is None else out_dtype

    # Feature padding only when N is not already a multiple of 128 (keep the
    # surrounding graph lane-dense to avoid this pad and the final slice).
    xp = x if n_pad == n else jnp.pad(x, ((0, 0), (0, n_pad - n)))

    if tm is None:
        tm = _pick_tm(b)
    # Pad the batch up to a tile multiple instead of degrading the tile size.
    b_pad = ((b + tm - 1) // tm) * tm
    if b_pad != b:
        xp = jnp.pad(xp, ((0, b_pad - b), (0, 0)))
    grid = (b_pad // tm,)

    w_item = np.dtype(params["w1"].dtype).itemsize
    x_item = np.dtype(xp.dtype).itemsize
    o_item = np.dtype(out_dtype).itemsize

    def build(single_buffer_weights):
        const_kwargs = {}
        if single_buffer_weights and hasattr(pl, "Buffered"):
            const_kwargs = {"pipeline_mode": pl.Buffered(1)}
        wbufs = 1 if (single_buffer_weights and const_kwargs) else 2

        # VMEM budget: weights/biases (constant blocks), double-buffered x/out
        # tiles, +25% and 2 MiB headroom, clamped to [16 MiB, 64 MiB] (v7x-safe).
        need = (wbufs * 2 * n_pad * n_pad * w_item      # W1, W2
                + 2 * 2 * n_pad * 4                     # b1, b2
                + 2 * tm * n_pad * x_item               # x tile (double-buffered)
                + 2 * tm * n_pad * o_item)              # out tile (double-buffered)
        vmem_limit = int(min(max(need * 1.25 + (2 << 20), 16 << 20), 64 << 20))

        return pl.pallas_call(
            reslin_kernel,
            out_shape=jax.ShapeDtypeStruct((b_pad, n_pad), out_dtype),
            grid_spec=pltpu.PrefetchScalarGridSpec(
                num_scalar_prefetch=0,
                grid=grid,
                in_specs=[
                    pl.BlockSpec((tm, n_pad), lambda i: (i, 0)),                    # x (pipelined)
                    pl.BlockSpec((n_pad, n_pad), lambda i: (0, 0), **const_kwargs),  # W1 (fetched once)
                    pl.BlockSpec((1, n_pad), lambda i: (0, 0), **const_kwargs),      # b1
                    pl.BlockSpec((n_pad, n_pad), lambda i: (0, 0), **const_kwargs),  # W2 (fetched once)
                    pl.BlockSpec((1, n_pad), lambda i: (0, 0), **const_kwargs),      # b2
                ],
                out_specs=pl.BlockSpec((tm, n_pad), lambda i: (i, 0)),              # lane-dense output
            ),
            compiler_params=pltpu.CompilerParams(
                dimension_semantics=("parallel",),       # batch tiles shard across TCs
                vmem_limit_bytes=vmem_limit,
            ),
        )

    args = (xp, params["w1"], params["b1"], params["w2"], params["b2"])
    try:
        out = build(True)(*args)
    except Exception:
        # Some Pallas versions reject pipeline_mode on pallas_call BlockSpecs;
        # fall back to default double-buffered constant blocks.
        out = build(False)(*args)

    if b_pad != b or n_pad != n:
        out = out[:b, :n]
    return out


def reslin_reference(x, w1, b1, w2, b2, *, compute_dtype=jnp.float32):
    """Plain-XLA reference mirroring the kernel's dtype strategy (compute-dtype
    MXU operands, f32 accumulation, f32 residual/tanh).  Weights in PyTorch
    (out, in) layout."""
    dims = (((1,), (1,)), ((), ()))
    cdt = compute_dtype
    h = lax.dot_general(x.astype(cdt), w1.astype(cdt), dims,
                        preferred_element_type=jnp.float32) + b1.astype(jnp.float32)
    h = jnp.tanh(h)
    y = lax.dot_general(h.astype(cdt), w2.astype(cdt), dims,
                        preferred_element_type=jnp.float32) + b2.astype(jnp.float32)
    return jnp.tanh(x.astype(jnp.float32) + y)


if __name__ == "__main__":
    key = jax.random.PRNGKey(0)
    keys = jax.random.split(key, 12)

    # --- 1) Small shapes consistent with the module: ResLin(in_n=32), batch=8, f32 ---
    B, N = 8, 32
    bound = 1.0 / (N ** 0.5)  # nn.Linear default init U(-1/sqrt(N), 1/sqrt(N))
    x = jax.random.normal(keys[0], (B, N), dtype=jnp.float32)
    w1 = jax.random.uniform(keys[1], (N, N), jnp.float32, -bound, bound)   # (out, in)
    b1 = jax.random.uniform(keys[2], (N,), jnp.float32, -bound, bound)
    w2 = jax.random.uniform(keys[3], (N, N), jnp.float32, -bound, bound)   # (out, in)
    b2 = jax.random.uniform(keys[4], (N,), jnp.float32, -bound, bound)

    params_f32 = prepare_reslin_params(w1, b1, w2, b2, compute_dtype=jnp.float32)
    out = jax.block_until_ready(reslin_forward(x, params_f32))
    ref = reslin_reference(x, w1, b1, w2, b2, compute_dtype=jnp.float32)
    assert out.shape == (B, N) and out.dtype == x.dtype
    assert jnp.allclose(out, ref, atol=1e-4, rtol=1e-4), "f32 mismatch vs reference"

    # --- 1b) Awkward batch size: remainder rows are zero-padded up to the tile ---
    Br = 100
    xr = jax.random.normal(keys[5], (Br, N), dtype=jnp.float32)
    outr = jax.block_until_ready(reslin_forward(xr, params_f32))
    refr = reslin_reference(xr, w1, b1, w2, b2, compute_dtype=jnp.float32)
    assert outr.shape == (Br, N)
    assert jnp.allclose(outr, refr, atol=1e-4, rtol=1e-4), "remainder-batch mismatch"

    # --- 2) Lane-dense bf16 MXU path, multi-step pipelined grid (tm=64 -> grid=(8,)) ---
    B2, N2 = 512, 128
    bound2 = 1.0 / (N2 ** 0.5)
    x2 = jax.random.normal(keys[6], (B2, N2), dtype=jnp.float32)
    w1b = jax.random.uniform(keys[7], (N2, N2), jnp.float32, -bound2, bound2)
    b1b = jax.random.uniform(keys[8], (N2,), jnp.float32, -bound2, bound2)
    w2b = jax.random.uniform(keys[9], (N2, N2), jnp.float32, -bound2, bound2)
    b2b = jax.random.uniform(keys[10], (N2,), jnp.float32, -bound2, bound2)

    params_bf16 = prepare_reslin_params(w1b, b1b, w2b, b2b, compute_dtype=jnp.bfloat16)
    out2 = jax.block_until_ready(reslin_forward(x2, params_bf16))
    ref2 = reslin_reference(x2, w1b, b1b, w2b, b2b, compute_dtype=jnp.bfloat16)
    assert out2.shape == (B2, N2) and out2.dtype == x2.dtype
    assert jnp.allclose(out2, ref2, atol=2e-2), "bf16 mismatch vs reference"

    print("KERNEL_OK")
</pallas_src>

<mosaic_0001>
module attributes {stable_mosaic.version = 11 : i64} {
  func.func @reslin_kernel(%arg0: i32, %arg1: memref<8x128xf32, #tpu.memory_space<vmem>>, %arg2: memref<128x128xf32, #tpu.memory_space<vmem>>, %arg3: memref<1x128xf32, #tpu.memory_space<vmem>>, %arg4: memref<128x128xf32, #tpu.memory_space<vmem>>, %arg5: memref<1x128xf32, #tpu.memory_space<vmem>>, %arg6: memref<8x128xf32, #tpu.memory_space<vmem>>) attributes {dimension_semantics = [#tpu.dimension_semantics<parallel>], iteration_bounds = array<i64: 1>, scalar_prefetch = 0 : i64, scratch_operands = 0 : i64, tpu.core_type = #tpu.core_type<tc>, window_params = [{transform_indices = @transform_0, window_bounds = array<i64: 8, 128>}, {pipeline_mode = #tpu.pipeline_mode<synchronous>, transform_indices = @transform_1, window_bounds = array<i64: 128, 128>}, {pipeline_mode = #tpu.pipeline_mode<synchronous>, transform_indices = @transform_2, window_bounds = array<i64: 1, 128>}, {pipeline_mode = #tpu.pipeline_mode<synchronous>, transform_indices = @transform_3, window_bounds = array<i64: 128, 128>}, {pipeline_mode = #tpu.pipeline_mode<synchronous>, transform_indices = @transform_4, window_bounds = array<i64: 1, 128>}, {transform_indices = @transform_5, window_bounds = array<i64: 8, 128>}]} {
    %c0 = arith.constant 0 : index
    %c0_0 = arith.constant 0 : index
    %0 = vector.load %arg1[%c0, %c0_0] : memref<8x128xf32, #tpu.memory_space<vmem>>, vector<8x128xf32>
    %c0_1 = arith.constant 0 : index
    %c0_2 = arith.constant 0 : index
    %1 = vector.load %arg2[%c0_1, %c0_2] : memref<128x128xf32, #tpu.memory_space<vmem>>, vector<128x128xf32>
    %cst = arith.constant dense<0.000000e+00> : vector<8x128xf32>
    %2 = tpu.matmul %0, %1, %cst {dimension_numbers = #tpu.dot_dimension_numbers<[1], [0], [0], [1], [0, 0, 1, 1], [], []>} : vector<8x128xf32>, vector<128x128xf32>, vector<8x128xf32> -> vector<8x128xf32>
    %c0_3 = arith.constant 0 : index
    %c0_4 = arith.constant 0 : index
    %3 = vector.load %arg3[%c0_3, %c0_4] : memref<1x128xf32, #tpu.memory_space<vmem>>, vector<1x128xf32>
    %4 = vector.broadcast %3 : vector<1x128xf32> to vector<8x128xf32>
    %5 = arith.addf %2, %4 : vector<8x128xf32>
    %6 = math.tanh %5 : vector<8x128xf32>
    %c0_5 = arith.constant 0 : index
    %c0_6 = arith.constant 0 : index
    %7 = vector.load %arg4[%c0_5, %c0_6] : memref<128x128xf32, #tpu.memory_space<vmem>>, vector<128x128xf32>
    %cst_7 = arith.constant dense<0.000000e+00> : vector<8x128xf32>
    %8 = tpu.matmul %6, %7, %cst_7 {dimension_numbers = #tpu.dot_dimension_numbers<[1], [0], [0], [1], [0, 0, 1, 1], [], []>} : vector<8x128xf32>, vector<128x128xf32>, vector<8x128xf32> -> vector<8x128xf32>
    %c0_8 = arith.constant 0 : index
    %c0_9 = arith.constant 0 : index
    %9 = vector.load %arg5[%c0_8, %c0_9] : memref<1x128xf32, #tpu.memory_space<vmem>>, vector<1x128xf32>
    %10 = vector.broadcast %9 : vector<1x128xf32> to vector<8x128xf32>
    %11 = arith.addf %8, %10 : vector<8x128xf32>
    %c0_10 = arith.constant 0 : index
    %c0_11 = arith.constant 0 : index
    %12 = vector.load %arg1[%c0_10, %c0_11] : memref<8x128xf32, #tpu.memory_space<vmem>>, vector<8x128xf32>
    %13 = arith.addf %12, %11 : vector<8x128xf32>
    %14 = math.tanh %13 : vector<8x128xf32>
    %c0_12 = arith.constant 0 : index
    %c0_13 = arith.constant 0 : index
    %15 = vector.load %arg6[%c0_12, %c0_13] : memref<8x128xf32, #tpu.memory_space<vmem>>, vector<8x128xf32>
    tpu.vector_store %arg6[%c0_12, %c0_13], %14 {strides = array<i32>} : memref<8x128xf32, #tpu.memory_space<vmem>>, vector<8x128xf32>,
    return
  }
  func.func @transform_0(%arg0: i32) -> (i32, i32) {
    %c0_i32 = arith.constant 0 : i32
    %c0_i32_0 = arith.constant 0 : i32
    return %arg0, %c0_i32 : i32, i32
  }
  func.func @transform_1(%arg0: i32) -> (i32, i32) {
    %c0_i32 = arith.constant 0 : i32
    %c0_i32_0 = arith.constant 0 : i32
    %c0_i32_1 = arith.constant 0 : i32
    return %c0_i32, %c0_i32_0 : i32, i32
  }
  func.func @transform_2(%arg0: i32) -> (i32, i32) {
    %c0_i32 = arith.constant 0 : i32
    %c0_i32_0 = arith.constant 0 : i32
    %c0_i32_1 = arith.constant 0 : i32
    return %c0_i32, %c0_i32_0 : i32, i32
  }
  func.func @transform_3(%arg0: i32) -> (i32, i32) {
    %c0_i32 = arith.constant 0 : i32
    %c0_i32_0 = arith.constant 0 : i32
    %c0_i32_1 = arith.constant 0 : i32
    return %c0_i32, %c0_i32_0 : i32, i32
  }
  func.func @transform_4(%arg0: i32) -> (i32, i32) {
    %c0_i32 = arith.constant 0 : i32
    %c0_i32_0 = arith.constant 0 : i32
    %c0_i32_1 = arith.constant 0 : i32
    return %c0_i32, %c0_i32_0 : i32, i32
  }
  func.func @transform_5(%arg0: i32) -> (i32, i32) {
    %c0_i32 = arith.constant 0 : i32
    %c0_i32_0 = arith.constant 0 : i32
    return %arg0, %c0_i32 : i32, i32
  }
}

module attributes {stable_mosaic.version = 11 : i64} {
  func.func @reslin_kernel(%arg0: i32, %arg1: memref<8x128xf32, #tpu.memory_space<vmem>>, %arg2: memref<128x128xf32, #tpu.memory_space<vmem>>, %arg3: memref<1x128xf32, #tpu.memory_space<vmem>>, %arg4: memref<128x128xf32, #tpu.memory_space<vmem>>, %arg5: memref<1x128xf32, #tpu.memory_space<vmem>>, %arg6: memref<8x128xf32, #tpu.memory_space<vmem>>) attributes {dimension_semantics = [#tpu.dimension_semantics<parallel>], iteration_bounds = array<i64: 1>, scalar_prefetch = 0 : i64, scratch_operands = 0 : i64, tpu.core_type = #tpu.core_type<tc>, window_params = [{transform_indices = @transform_0, window_bounds = array<i64: 8, 128>}, {pipeline_mode = #tpu.pipeline_mode<synchronous>, transform_indices = @transform_1, window_bounds = array<i64: 128, 128>}, {pipeline_mode = #tpu.pipeline_mode<synchronous>, transform_indices = @transform_2, window_bounds = array<i64: 1, 128>}, {pipeline_mode = #tpu.pipeline_mode<synchronous>, transform_indices = @transform_3, window_bounds = array<i64: 128, 128>}, {pipeline_mode = #tpu.pipeline_mode<synchronous>, transform_indices = @transform_4, window_bounds = array<i64: 1, 128>}, {transform_indices = @transform_5, window_bounds = array<i64: 8, 128>}]} {
    %c0 = arith.constant 0 : index
    %c0_0 = arith.constant 0 : index
    %0 = vector.load %arg1[%c0, %c0_0] : memref<8x128xf32, #tpu.memory_space<vmem>>, vector<8x128xf32>
    %c0_1 = arith.constant 0 : index
    %c0_2 = arith.constant 0 : index
    %1 = vector.load %arg2[%c0_1, %c0_2] : memref<128x128xf32, #tpu.memory_space<vmem>>, vector<128x128xf32>
    %cst = arith.constant dense<0.000000e+00> : vector<8x128xf32>
    %2 = tpu.matmul %0, %1, %cst {dimension_numbers = #tpu.dot_dimension_numbers<[1], [0], [0], [1], [0, 0, 1, 1], [], []>} : vector<8x128xf32>, vector<128x128xf32>, vector<8x128xf32> -> vector<8x128xf32>
    %c0_3 = arith.constant 0 : index
    %c0_4 = arith.constant 0 : index
    %3 = vector.load %arg3[%c0_3, %c0_4] : memref<1x128xf32, #tpu.memory_space<vmem>>, vector<1x128xf32>
    %4 = vector.broadcast %3 : vector<1x128xf32> to vector<8x128xf32>
    %5 = arith.addf %2, %4 : vector<8x128xf32>
    %6 = math.tanh %5 : vector<8x128xf32>
    %c0_5 = arith.constant 0 : index
    %c0_6 = arith.constant 0 : index
    %7 = vector.load %arg4[%c0_5, %c0_6] : memref<128x128xf32, #tpu.memory_space<vmem>>, vector<128x128xf32>
    %cst_7 = arith.constant dense<0.000000e+00> : vector<8x128xf32>
    %8 = tpu.matmul %6, %7, %cst_7 {dimension_numbers = #tpu.dot_dimension_numbers<[1], [0], [0], [1], [0, 0, 1, 1], [], []>} : vector<8x128xf32>, vector<128x128xf32>, vector<8x128xf32> -> vector<8x128xf32>
    %c0_8 = arith.constant 0 : index
    %c0_9 = arith.constant 0 : index
    %9 = vector.load %arg5[%c0_8, %c0_9] : memref<1x128xf32, #tpu.memory_space<vmem>>, vector<1x128xf32>
    %10 = vector.broadcast %9 : vector<1x128xf32> to vector<8x128xf32>
    %11 = arith.addf %8, %10 : vector<8x128xf32>
    %c0_10 = arith.constant 0 : index
    %c0_11 = arith.constant 0 : index
    %12 = vector.load %arg1[%c0_10, %c0_11] : memref<8x128xf32, #tpu.memory_space<vmem>>, vector<8x128xf32>
    %13 = arith.addf %12, %11 : vector<8x128xf32>
    %14 = math.tanh %13 : vector<8x128xf32>
    %c0_12 = arith.constant 0 : index
    %c0_13 = arith.constant 0 : index
    %15 = vector.load %arg6[%c0_12, %c0_13] : memref<8x128xf32, #tpu.memory_space<vmem>>, vector<8x128xf32>
    tpu.vector_store %arg6[%c0_12, %c0_13], %14 {strides = array<i32>} : memref<8x128xf32, #tpu.memory_space<vmem>>, vector<8x128xf32>,
    return
  }
  func.func @transform_0(%arg0: i32) -> (i32, i32) {
    %c0_i32 = arith.constant 0 : i32
    %c0_i32_0 = arith.constant 0 : i32
    return %arg0, %c0_i32 : i32, i32
  }
  func.func @transform_1(%arg0: i32) -> (i32, i32) {
    %c0_i32 = arith.constant 0 : i32
    %c0_i32_0 = arith.constant 0 : i32
    %c0_i32_1 = arith.constant 0 : i32
    return %c0_i32, %c0_i32_0 : i32, i32
  }
  func.func @transform_2(%arg0: i32) -> (i32, i32) {
    %c0_i32 = arith.constant 0 : i32
    %c0_i32_0 = arith.constant 0 : i32
    %c0_i32_1 = arith.constant 0 : i32
    return %c0_i32, %c0_i32_0 : i32, i32
  }
  func.func @transform_3(%arg0: i32) -> (i32, i32) {
    %c0_i32 = arith.constant 0 : i32
    %c0_i32_0 = arith.constant 0 : i32
    %c0_i32_1 = arith.constant 0 : i32
    return %c0_i32, %c0_i32_0 : i32, i32
  }
  func.func @transform_4(%arg0: i32) -> (i32, i32) {
    %c0_i32 = arith.constant 0 : i32
    %c0_i32_0 = arith.constant 0 : i32
    %c0_i32_1 = arith.constant 0 : i32
    return %c0_i32, %c0_i32_0 : i32, i32
  }
  func.func @transform_5(%arg0: i32) -> (i32, i32) {
    %c0_i32 = arith.constant 0 : i32
    %c0_i32_0 = arith.constant 0 : i32
    return %arg0, %c0_i32 : i32, i32
  }
}

</mosaic_0001>

<llo_original>
// kernel: tpu_custom_call.1
$region0: #{tpu_custom_call.1}
  #allocation0 [shape = 'u32[]', space=smem, size = 0x4, offset = 0x4, fixed_abs, tag = 'smem constant byte address 0x4 - core index']
  #allocation1 [shape = 'u32[144,128]{1,0:T(1,128)}', space=vmem, size = 0x12000, scoped, tag = 'internal scratch']
  %s0 = inlined_call_operand.hbm [shape: f32[8,128], index: 0, kind: input, shape index: {}]
  %s1 = inlined_call_operand.hbm [shape: f32[128,128], index: 1, kind: input, shape index: {}]
  %s2 = inlined_call_operand.vmem [shape: f32[1,128], index: 2, kind: input, shape index: {}]
  %s3 = inlined_call_operand.hbm [shape: f32[128,128], index: 3, kind: input, shape index: {}]
  %s4 = inlined_call_operand.vmem [shape: f32[1,128], index: 4, kind: input, shape index: {}]
  %s5 = inlined_call_operand.hbm [shape: f32[8,128], index: 5, kind: output, shape index: {}]
  %s6 = sld [smem:[#allocation0]]
  $region42: #{tpu_custom_call.1} parent=0
    _
  %s8 = ssub.s32 1, %s6
  %s9 = scalar_select 0, %s8, %s6
  $region1: #{tpu_custom_call.1} parent=0
    #allocation2 [shape = 'u8[4096]{0}', space=vmem, size = 0x1000, scoped, tag = 'input window, operand 0, single buffered']
    #allocation3 [shape = 's32[1]{0}', space=sflag, size = 0x4, scoped, tag = 'scoped memory for tpu_custom_call.1']
    #allocation4 [shape = 's32[1]{0}', space=sflag, size = 0x4, scoped, tag = 'scoped memory for tpu_custom_call.1']
    #allocation5 [shape = 'u8[65536]{0}', space=vmem, size = 0x10000, scoped, tag = 'input window, operand 1, single buffered']
    #allocation6 [shape = 's32[1]{0}', space=sflag, size = 0x4, scoped, tag = 'scoped memory for tpu_custom_call.1']
    #allocation7 [shape = 'u8[65536]{0}', space=vmem, size = 0x10000, scoped, tag = 'input window, operand 3, single buffered']
    #allocation8 [shape = 'u8[4096]{0}', space=vmem, size = 0x1000, scoped, tag = 'output window, operand 0, single buffered']
    %10 = vsyncpa [#allocation3], 0
    %11 = vsyncpa [#allocation6], 0
    %12 = vsyncpa [#allocation4], 0
    // Predicated region
    $region2: #{tpu_custom_call.1} parent=1 // pred_check
      _
    $region3: #{tpu_custom_call.1} parent=1 // pred_check_branch
      %14 = sbr.rel (0) target = $region5
    $region4: #{tpu_custom_call.1} parent=1 // pred_region
      %s16 = ssub.s32 128, 128
      %17 = vsyncadd [#allocation3], %s16
      %s19 = sshll.u32 [#allocation2], 4
      %s20 = int_to_ptr.vmem [resolvable:$true] %s19
      %22 = dma.hbm_to_vmem [thread:$0]  %s0, 128, %s20, [#allocation3]
    $region5: #{tpu_custom_call.1} parent=1 // pred_fallthru
      _
    // Predicated region
    $region6: #{tpu_custom_call.1} parent=1 // pred_check
      _
    $region7: #{tpu_custom_call.1} parent=1 // pred_check_branch
      %24 = sbr.rel (0) target = $region9
    $region8: #{tpu_custom_call.1} parent=1 // pred_region
      %s26 = ssub.s32 2048, 2048
      %27 = vsyncadd [#allocation6], %s26
      %s28 = sshll.u32 [#allocation5], 4
      %s29 = int_to_ptr.vmem [resolvable:$true] %s28
      %34 = dma.hbm_to_vmem [thread:$0]  %s1, 2048, %s29, [#allocation6], 128, 128, 8
    $region9: #{tpu_custom_call.1} parent=1 // pred_fallthru
      _
    // Predicated region
    $region10: #{tpu_custom_call.1} parent=1 // pred_check
      _
    $region11: #{tpu_custom_call.1} parent=1 // pred_check_branch
      %36 = sbr.rel (0) target = $region13
    $region12: #{tpu_custom_call.1} parent=1 // pred_region
      _
    $region13: #{tpu_custom_call.1} parent=1 // pred_fallthru
      _
    // Predicated region
    $region14: #{tpu_custom_call.1} parent=1 // pred_check
      _
    $region15: #{tpu_custom_call.1} parent=1 // pred_check_branch
      %38 = sbr.rel (0) target = $region17
    $region16: #{tpu_custom_call.1} parent=1 // pred_region
      %s40 = ssub.s32 2048, 2048
      %41 = vsyncadd [#allocation6], %s40
      %s42 = sshll.u32 [#allocation7], 4
      %s43 = int_to_ptr.vmem [resolvable:$true] %s42
      %48 = dma.hbm_to_vmem [thread:$0]  %s3, 2048, %s43, [#allocation6], 128, 128, 8
    $region17: #{tpu_custom_call.1} parent=1 // pred_fallthru
      _
    // Predicated region
    $region18: #{tpu_custom_call.1} parent=1 // pred_check
      _
    $region19: #{tpu_custom_call.1} parent=1 // pred_check_branch
      %50 = sbr.rel (0) target = $region21
    $region20: #{tpu_custom_call.1} parent=1 // pred_region
      _
    $region21: #{tpu_custom_call.1} parent=1 // pred_fallthru
      _
    // Predicated region
    $region22: #{tpu_custom_call.1} parent=1 // pred_check
      _
    $region23: #{tpu_custom_call.1} parent=1 // pred_check_branch
      %52 = sbr.rel (0) target = $region25
    $region24: #{tpu_custom_call.1} parent=1 // pred_region
      %53 = dma.done [#allocation3], 128
    $region25: #{tpu_custom_call.1} parent=1 // pred_fallthru
      _
    // Predicated region
    $region26: #{tpu_custom_call.1} parent=1 // pred_check
      _
    $region27: #{tpu_custom_call.1} parent=1 // pred_check_branch
      %55 = sbr.rel (0) target = $region29
    $region28: #{tpu_custom_call.1} parent=1 // pred_region
      %56 = dma.done [#allocation6], 2048
    $region29: #{tpu_custom_call.1} parent=1 // pred_fallthru
      _
    // Predicated region
    $region30: #{tpu_custom_call.1} parent=1 // pred_check
      _
    $region31: #{tpu_custom_call.1} parent=1 // pred_check_branch
      %58 = sbr.rel (0) target = $region33
    $region32: #{tpu_custom_call.1} parent=1 // pred_region
      %59 = dma.done [#allocation6], 2048
    $region33: #{tpu_custom_call.1} parent=1 // pred_fallthru
      _
    %v60 = vld [vmem:[#allocation2] sm:$0xff]
    %v61 = vld [vmem:[#allocation5] sm:$0xff]
    %v62 = vld [vmem:[#allocation5 + $0x8] sm:$0xff]
    %v63 = vld [vmem:[#allocation5 + $0x10] sm:$0xff]
    %v64 = vld [vmem:[#allocation5 + $0x18] sm:$0xff]
    %v65 = vld [vmem:[#allocation5 + $0x20] sm:$0xff]
    %v66 = vld [vmem:[#allocation5 + $0x28] sm:$0xff]
    %v67 = vld [vmem:[#allocation5 + $0x30] sm:$0xff]
    %v68 = vld [vmem:[#allocation5 + $0x38] sm:$0xff]
    %v69 = vld [vmem:[#allocation5 + $0x40] sm:$0xff]
    %v70 = vld [vmem:[#allocation5 + $0x48] sm:$0xff]
    %v71 = vld [vmem:[#allocation5 + $0x50] sm:$0xff]
    %v72 = vld [vmem:[#allocation5 + $0x58] sm:$0xff]
    %v73 = vld [vmem:[#allocation5 + $0x60] sm:$0xff]
    %v74 = vld [vmem:[#allocation5 + $0x68] sm:$0xff]
    %v75 = vld [vmem:[#allocation5 + $0x70] sm:$0xff]
    %v76 = vld [vmem:[#allocation5 + $0x78] sm:$0xff]
    %v77 = vld [vmem:[%s2] sm:$0x1]
    %v79 = vlaneseq
    %v80 = vshrl.u32 %v79, 7
    %v81 = vsub.s32 0, %v80
    %v82 = vrot.slane %v77, %v81
    %84 = vmatprep.subr.mxu0 0.0
    %85 = vmatpush1.msra.mxu0 %v61
    %86 = vmatprep.subr.mxu0 0.0
    %87 = vmatpush1.msra.mxu0 %v62
    %88 = vmatprep.subr.mxu0 0.0
    %89 = vmatpush1.msra.mxu0 %v63
    %90 = vmatprep.subr.mxu0 0.0
    %91 = vmatpush1.msra.mxu0 %v64
    %92 = vmatprep.subr.mxu0 0.0
    %93 = vmatpush1.msra.mxu0 %v65
    %94 = vmatprep.subr.mxu0 0.0
    %95 = vmatpush1.msra.mxu0 %v66
    %96 = vmatprep.subr.mxu0 0.0
    %97 = vmatpush1.msra.mxu0 %v67
    %98 = vmatprep.subr.mxu0 0.0
    %99 = vmatpush1.msra.mxu0 %v68
    %100 = vmatprep.subr.mxu0 0.0
    %101 = vmatpush1.msra.mxu0 %v69
    %102 = vmatprep.subr.mxu0 0.0
    %103 = vmatpush1.msra.mxu0 %v70
    %104 = vmatprep.subr.mxu0 0.0
    %105 = vmatpush1.msra.mxu0 %v71
    %106 = vmatprep.subr.mxu0 0.0
    %107 = vmatpush1.msra.mxu0 %v72
    %108 = vmatprep.subr.mxu0 0.0
    %109 = vmatpush1.msra.mxu0 %v73
    %110 = vmatprep.subr.mxu0 0.0
    %111 = vmatpush1.msra.mxu0 %v74
    %112 = vmatprep.subr.mxu0 0.0
    %113 = vmatpush1.msra.mxu0 %v75
    %114 = vmatprep.subr.mxu0 0.0
    %115 = vmatpush1.msra.mxu0 %v76
    %116 = vmatprep.subr.mxu0 0.0
    %117 = vmatpush1.msra.mxu0 0.0
    %118 = vmatprep.subr.mxu0 0.0
    %119 = vmatpush1.msra.mxu0 0.0
    %120 = vmatprep.subr.mxu0 0.0
    %121 = vmatpush1.msra.mxu0 0.0
    %122 = vmatprep.subr.mxu0 0.0
    %123 = vmatpush1.msra.mxu0 0.0
    %124 = vmatprep.subr.mxu0 0.0
    %125 = vmatpush1.msra.mxu0 0.0
    %126 = vmatprep.subr.mxu0 0.0
    %127 = vmatpush1.msra.mxu0 0.0
    %128 = vmatprep.subr.mxu0 0.0
    %129 = vmatpush1.msra.mxu0 0.0
    %130 = vmatprep.subr.mxu0 0.0
    %131 = vmatpush1.msra.mxu0 0.0
    %132 = vmatprep.subr.mxu0 0.0
    %133 = vmatpush1.msra.mxu0 0.0
    %134 = vmatprep.subr.mxu0 0.0
    %135 = vmatpush1.msra.mxu0 0.0
    %136 = vmatprep.subr.mxu0 0.0
    %137 = vmatpush1.msra.mxu0 0.0
    %138 = vmatprep.subr.mxu0 0.0
    %139 = vmatpush1.msra.mxu0 0.0
    %140 = vmatprep.subr.mxu0 0.0
    %141 = vmatpush1.msra.mxu0 0.0
    %142 = vmatprep.subr.mxu0 0.0
    %143 = vmatpush1.msra.mxu0 0.0
    %144 = vmatprep.subr.mxu0 0.0
    %145 = vmatpush1.msra.mxu0 0.0
    %146 = vmatprep.subr.mxu0 0.0
    %147 = vmatpush1.msra.mxu0 0.0
    %148 = vmatprep.mubr.f32.mxu0 0.0
    %149 = vmatmul.mubr.f32.gmra.mrb[0].mxu0 %v60
    %v150 = vpop.f32.mrb[0].mxu0
    %v151 = vadd.f32 %v82, %v150
    %v152 = vpop.f32.mrb[0].mxu0
    %153 = vdwg.mxu0
    %v154 = vtanh.pop %v151
    %v155 = vld [vmem:[#allocation7] sm:$0xff]
    %v156 = vld [vmem:[#allocation7 + $0x8] sm:$0xff]
    %v157 = vld [vmem:[#allocation7 + $0x10] sm:$0xff]
    %v158 = vld [vmem:[#allocation7 + $0x18] sm:$0xff]
    %v159 = vld [vmem:[#allocation7 + $0x20] sm:$0xff]
    %v160 = vld [vmem:[#allocation7 + $0x28] sm:$0xff]
    %v161 = vld [vmem:[#allocation7 + $0x30] sm:$0xff]
    %v162 = vld [vmem:[#allocation7 + $0x38] sm:$0xff]
    %v163 = vld [vmem:[#allocation7 + $0x40] sm:$0xff]
    %v164 = vld [vmem:[#allocation7 + $0x48] sm:$0xff]
    %v165 = vld [vmem:[#allocation7 + $0x50] sm:$0xff]
    %v166 = vld [vmem:[#allocation7 + $0x58] sm:$0xff]
    %v167 = vld [vmem:[#allocation7 + $0x60] sm:$0xff]
    %v168 = vld [vmem:[#allocation7 + $0x68] sm:$0xff]
    %v169 = vld [vmem:[#allocation7 + $0x70] sm:$0xff]
    %v170 = vld [vmem:[#allocation7 + $0x78] sm:$0xff]
    %v171 = vld [vmem:[%s4] sm:$0x1]
    %v173 = vlaneseq
    %v174 = vshrl.u32 %v173, 7
    %v175 = vsub.s32 0, %v174
    %v176 = vrot.slane %v171, %v175
    %178 = vmatprep.subr.mxu0 0.0
    %179 = vmatpush1.msra.mxu0 %v155
    %180 = vmatprep.subr.mxu0 0.0
    %181 = vmatpush1.msra.mxu0 %v156
    %182 = vmatprep.subr.mxu0 0.0
    %183 = vmatpush1.msra.mxu0 %v157
    %184 = vmatprep.subr.mxu0 0.0
    %185 = vmatpush1.msra.mxu0 %v158
    %186 = vmatprep.subr.mxu0 0.0
    %187 = vmatpush1.msra.mxu0 %v159
    %188 = vmatprep.subr.mxu0 0.0
    %189 = vmatpush1.msra.mxu0 %v160
    %190 = vmatprep.subr.mxu0 0.0
    %191 = vmatpush1.msra.mxu0 %v161
    %192 = vmatprep.subr.mxu0 0.0
    %193 = vmatpush1.msra.mxu0 %v162
    %194 = vmatprep.subr.mxu0 0.0
    %195 = vmatpush1.msra.mxu0 %v163
    %196 = vmatprep.subr.mxu0 0.0
    %197 = vmatpush1.msra.mxu0 %v164
    %198 = vmatprep.subr.mxu0 0.0
    %199 = vmatpush1.msra.mxu0 %v165
    %200 = vmatprep.subr.mxu0 0.0
    %201 = vmatpush1.msra.mxu0 %v166
    %202 = vmatprep.subr.mxu0 0.0
    %203 = vmatpush1.msra.mxu0 %v167
    %204 = vmatprep.subr.mxu0 0.0
    %205 = vmatpush1.msra.mxu0 %v168
    %206 = vmatprep.subr.mxu0 0.0
    %207 = vmatpush1.msra.mxu0 %v169
    %208 = vmatprep.subr.mxu0 0.0
    %209 = vmatpush1.msra.mxu0 %v170
    %210 = vmatprep.subr.mxu0 0.0
    %211 = vmatpush1.msra.mxu0 0.0
    %212 = vmatprep.subr.mxu0 0.0
    %213 = vmatpush1.msra.mxu0 0.0
    %214 = vmatprep.subr.mxu0 0.0
    %215 = vmatpush1.msra.mxu0 0.0
    %216 = vmatprep.subr.mxu0 0.0
    %217 = vmatpush1.msra.mxu0 0.0
    %218 = vmatprep.subr.mxu0 0.0
    %219 = vmatpush1.msra.mxu0 0.0
    %220 = vmatprep.subr.mxu0 0.0
    %221 = vmatpush1.msra.mxu0 0.0
    %222 = vmatprep.subr.mxu0 0.0
    %223 = vmatpush1.msra.mxu0 0.0
    %224 = vmatprep.subr.mxu0 0.0
    %225 = vmatpush1.msra.mxu0 0.0
    %226 = vmatprep.subr.mxu0 0.0
    %227 = vmatpush1.msra.mxu0 0.0
    %228 = vmatprep.subr.mxu0 0.0
    %229 = vmatpush1.msra.mxu0 0.0
    %230 = vmatprep.subr.mxu0 0.0
    %231 = vmatpush1.msra.mxu0 0.0
    %232 = vmatprep.subr.mxu0 0.0
    %233 = vmatpush1.msra.mxu0 0.0
    %234 = vmatprep.subr.mxu0 0.0
    %235 = vmatpush1.msra.mxu0 0.0
    %236 = vmatprep.subr.mxu0 0.0
    %237 = vmatpush1.msra.mxu0 0.0
    %238 = vmatprep.subr.mxu0 0.0
    %239 = vmatpush1.msra.mxu0 0.0
    %240 = vmatprep.subr.mxu0 0.0
    %241 = vmatpush1.msra.mxu0 0.0
    %242 = vmatprep.mubr.f32.mxu0 0.0
    %243 = vmatmul.mubr.f32.gmra.mrb[0].mxu0 %v154
    %v244 = vpop.f32.mrb[0].mxu0
    %v245 = vadd.f32 %v176, %v244
    %v246 = vpop.f32.mrb[0].mxu0
    %247 = vdwg.mxu0
    %v248 = vadd.f32 %v60, %v245
    %v249 = vtanh.pop %v248
    %250 = vst [vmem:[#allocation8] sm:$0xff] %v249
    // Predicated region
    $region34: #{tpu_custom_call.1} parent=1 // pred_check
      _
    $region35: #{tpu_custom_call.1} parent=1 // pred_check_branch
      %252 = sbr.rel (0) target = $region37
    $region36: #{tpu_custom_call.1} parent=1 // pred_region
      %s254 = ssub.s32 128, 128
      %255 = vsyncadd [#allocation4], %s254
      %s257 = sshll.u32 [#allocation8], 4
      %s258 = int_to_ptr.vmem [resolvable:$true] %s257
      %260 = dma.vmem_to_hbm [thread:$0]  %s258, 128, %s5, [#allocation4]
    $region37: #{tpu_custom_call.1} parent=1 // pred_fallthru
      _
    // Predicated region
    $region38: #{tpu_custom_call.1} parent=1 // pred_check
      _
    $region39: #{tpu_custom_call.1} parent=1 // pred_check_branch
      %262 = sbr.rel (0) target = $region41
    $region40: #{tpu_custom_call.1} parent=1 // pred_region
      %263 = dma.done [#allocation4], 128
    $region41: #{tpu_custom_call.1} parent=1 // pred_fallthru
      _
    %264 = vsyncpa [#allocation3], 1
    %265 = vsyncpa [#allocation6], 1
    %266 = vsyncpa [#allocation4], 1

// kernel: tpu_custom_call.1
$region0: #{tpu_custom_call.1}
  #allocation0 [shape = 'u32[]', space=smem, size = 0x4, offset = 0x4, fixed_abs, tag = 'smem constant byte address 0x4 - core index']
  #allocation1 [shape = 'u32[144,128]{1,0:T(1,128)}', space=vmem, size = 0x12000, scoped, tag = 'internal scratch']
  %s0 = inlined_call_operand.hbm [shape: f32[8,128], index: 0, kind: input, shape index: {}]
  %s1 = inlined_call_operand.hbm [shape: f32[128,128], index: 1, kind: input, shape index: {}]
  %s2 = inlined_call_operand.vmem [shape: f32[1,128], index: 2, kind: input, shape index: {}]
  %s3 = inlined_call_operand.hbm [shape: f32[128,128], index: 3, kind: input, shape index: {}]
  %s4 = inlined_call_operand.vmem [shape: f32[1,128], index: 4, kind: input, shape index: {}]
  %s5 = inlined_call_operand.hbm [shape: f32[8,128], index: 5, kind: output, shape index: {}]
  %s6 = sld [smem:[#allocation0]]
  $region42: #{tpu_custom_call.1} parent=0
    _
  %s8 = ssub.s32 1, %s6
  %s9 = scalar_select 0, %s8, %s6
  $region1: #{tpu_custom_call.1} parent=0
    #allocation2 [shape = 'u8[4096]{0}', space=vmem, size = 0x1000, scoped, tag = 'input window, operand 0, single buffered']
    #allocation3 [shape = 's32[1]{0}', space=sflag, size = 0x4, scoped, tag = 'scoped memory for tpu_custom_call.1']
    #allocation4 [shape = 's32[1]{0}', space=sflag, size = 0x4, scoped, tag = 'scoped memory for tpu_custom_call.1']
    #allocation5 [shape = 'u8[65536]{0}', space=vmem, size = 0x10000, scoped, tag = 'input window, operand 1, single buffered']
    #allocation6 [shape = 's32[1]{0}', space=sflag, size = 0x4, scoped, tag = 'scoped memory for tpu_custom_call.1']
    #allocation7 [shape = 'u8[65536]{0}', space=vmem, size = 0x10000, scoped, tag = 'input window, operand 3, single buffered']
    #allocation8 [shape = 'u8[4096]{0}', space=vmem, size = 0x1000, scoped, tag = 'output window, operand 0, single buffered']
    %10 = vsyncpa [#allocation3], 0
    %11 = vsyncpa [#allocation6], 0
    %12 = vsyncpa [#allocation4], 0
    // Predicated region
    $region2: #{tpu_custom_call.1} parent=1 // pred_check
      _
    $region3: #{tpu_custom_call.1} parent=1 // pred_check_branch
      %14 = sbr.rel (0) target = $region5
    $region4: #{tpu_custom_call.1} parent=1 // pred_region
      %s16 = ssub.s32 128, 128
      %17 = vsyncadd [#allocation3], %s16
      %s19 = sshll.u32 [#allocation2], 4
      %s20 = int_to_ptr.vmem [resolvable:$true] %s19
      %22 = dma.hbm_to_vmem [thread:$0]  %s0, 128, %s20, [#allocation3]
    $region5: #{tpu_custom_call.1} parent=1 // pred_fallthru
      _
    // Predicated region
    $region6: #{tpu_custom_call.1} parent=1 // pred_check
      _
    $region7: #{tpu_custom_call.1} parent=1 // pred_check_branch
      %24 = sbr.rel (0) target = $region9
    $region8: #{tpu_custom_call.1} parent=1 // pred_region
      %s26 = ssub.s32 2048, 2048
      %27 = vsyncadd [#allocation6], %s26
      %s28 = sshll.u32 [#allocation5], 4
      %s29 = int_to_ptr.vmem [resolvable:$true] %s28
      %34 = dma.hbm_to_vmem [thread:$0]  %s1, 2048, %s29, [#allocation6], 128, 128, 8
    $region9: #{tpu_custom_call.1} parent=1 // pred_fallthru
      _
    // Predicated region
    $region10: #{tpu_custom_call.1} parent=1 // pred_check
      _
    $region11: #{tpu_custom_call.1} parent=1 // pred_check_branch
      %36 = sbr.rel (0) target = $region13
    $region12: #{tpu_custom_call.1} parent=1 // pred_region
      _
    $region13: #{tpu_custom_call.1} parent=1 // pred_fallthru
      _
    // Predicated region
    $region14: #{tpu_custom_call.1} parent=1 // pred_check
      _
    $region15: #{tpu_custom_call.1} parent=1 // pred_check_branch
      %38 = sbr.rel (0) target = $region17
    $region16: #{tpu_custom_call.1} parent=1 // pred_region
      %s40 = ssub.s32 2048, 2048
      %41 = vsyncadd [#allocation6], %s40
      %s42 = sshll.u32 [#allocation7], 4
      %s43 = int_to_ptr.vmem [resolvable:$true] %s42
      %48 = dma.hbm_to_vmem [thread:$0]  %s3, 2048, %s43, [#allocation6], 128, 128, 8
    $region17: #{tpu_custom_call.1} parent=1 // pred_fallthru
      _
    // Predicated region
    $region18: #{tpu_custom_call.1} parent=1 // pred_check
      _
    $region19: #{tpu_custom_call.1} parent=1 // pred_check_branch
      %50 = sbr.rel (0) target = $region21
    $region20: #{tpu_custom_call.1} parent=1 // pred_region
      _
    $region21: #{tpu_custom_call.1} parent=1 // pred_fallthru
      _
    // Predicated region
    $region22: #{tpu_custom_call.1} parent=1 // pred_check
      _
    $region23: #{tpu_custom_call.1} parent=1 // pred_check_branch
      %52 = sbr.rel (0) target = $region25
    $region24: #{tpu_custom_call.1} parent=1 // pred_region
      %53 = dma.done [#allocation3], 128
    $region25: #{tpu_custom_call.1} parent=1 // pred_fallthru
      _
    // Predicated region
    $region26: #{tpu_custom_call.1} parent=1 // pred_check
      _
    $region27: #{tpu_custom_call.1} parent=1 // pred_check_branch
      %55 = sbr.rel (0) target = $region29
    $region28: #{tpu_custom_call.1} parent=1 // pred_region
      %56 = dma.done [#allocation6], 2048
    $region29: #{tpu_custom_call.1} parent=1 // pred_fallthru
      _
    // Predicated region
    $region30: #{tpu_custom_call.1} parent=1 // pred_check
      _
    $region31: #{tpu_custom_call.1} parent=1 // pred_check_branch
      %58 = sbr.rel (0) target = $region33
    $region32: #{tpu_custom_call.1} parent=1 // pred_region
      %59 = dma.done [#allocation6], 2048
    $region33: #{tpu_custom_call.1} parent=1 // pred_fallthru
      _
    %v60 = vld [vmem:[#allocation2] sm:$0xff]
    %v61 = vld [vmem:[#allocation5] sm:$0xff]
    %v62 = vld [vmem:[#allocation5 + $0x8] sm:$0xff]
    %v63 = vld [vmem:[#allocation5 + $0x10] sm:$0xff]
    %v64 = vld [vmem:[#allocation5 + $0x18] sm:$0xff]
    %v65 = vld [vmem:[#allocation5 + $0x20] sm:$0xff]
    %v66 = vld [vmem:[#allocation5 + $0x28] sm:$0xff]
    %v67 = vld [vmem:[#allocation5 + $0x30] sm:$0xff]
    %v68 = vld [vmem:[#allocation5 + $0x38] sm:$0xff]
    %v69 = vld [vmem:[#allocation5 + $0x40] sm:$0xff]
    %v70 = vld [vmem:[#allocation5 + $0x48] sm:$0xff]
    %v71 = vld [vmem:[#allocation5 + $0x50] sm:$0xff]
    %v72 = vld [vmem:[#allocation5 + $0x58] sm:$0xff]
    %v73 = vld [vmem:[#allocation5 + $0x60] sm:$0xff]
    %v74 = vld [vmem:[#allocation5 + $0x68] sm:$0xff]
    %v75 = vld [vmem:[#allocation5 + $0x70] sm:$0xff]
    %v76 = vld [vmem:[#allocation5 + $0x78] sm:$0xff]
    %v77 = vld [vmem:[%s2] sm:$0x1]
    %v79 = vlaneseq
    %v80 = vshrl.u32 %v79, 7
    %v81 = vsub.s32 0, %v80
    %v82 = vrot.slane %v77, %v81
    %84 = vmatprep.subr.mxu0 0.0
    %85 = vmatpush1.msra.mxu0 %v61
    %86 = vmatprep.subr.mxu0 0.0
    %87 = vmatpush1.msra.mxu0 %v62
    %88 = vmatprep.subr.mxu0 0.0
    %89 = vmatpush1.msra.mxu0 %v63
    %90 = vmatprep.subr.mxu0 0.0
    %91 = vmatpush1.msra.mxu0 %v64
    %92 = vmatprep.subr.mxu0 0.0
    %93 = vmatpush1.msra.mxu0 %v65
    %94 = vmatprep.subr.mxu0 0.0
    %95 = vmatpush1.msra.mxu0 %v66
    %96 = vmatprep.subr.mxu0 0.0
    %97 = vmatpush1.msra.mxu0 %v67
    %98 = vmatprep.subr.mxu0 0.0
    %99 = vmatpush1.msra.mxu0 %v68
    %100 = vmatprep.subr.mxu0 0.0
    %101 = vmatpush1.msra.mxu0 %v69
    %102 = vmatprep.subr.mxu0 0.0
    %103 = vmatpush1.msra.mxu0 %v70
    %104 = vmatprep.subr.mxu0 0.0
    %105 = vmatpush1.msra.mxu0 %v71
    %106 = vmatprep.subr.mxu0 0.0
    %107 = vmatpush1.msra.mxu0 %v72
    %108 = vmatprep.subr.mxu0 0.0
    %109 = vmatpush1.msra.mxu0 %v73
    %110 = vmatprep.subr.mxu0 0.0
    %111 = vmatpush1.msra.mxu0 %v74
    %112 = vmatprep.subr.mxu0 0.0
    %113 = vmatpush1.msra.mxu0 %v75
    %114 = vmatprep.subr.mxu0 0.0
    %115 = vmatpush1.msra.mxu0 %v76
    %116 = vmatprep.subr.mxu0 0.0
    %117 = vmatpush1.msra.mxu0 0.0
    %118 = vmatprep.subr.mxu0 0.0
    %119 = vmatpush1.msra.mxu0 0.0
    %120 = vmatprep.subr.mxu0 0.0
    %121 = vmatpush1.msra.mxu0 0.0
    %122 = vmatprep.subr.mxu0 0.0
    %123 = vmatpush1.msra.mxu0 0.0
    %124 = vmatprep.subr.mxu0 0.0
    %125 = vmatpush1.msra.mxu0 0.0
    %126 = vmatprep.subr.mxu0 0.0
    %127 = vmatpush1.msra.mxu0 0.0
    %128 = vmatprep.subr.mxu0 0.0
    %129 = vmatpush1.msra.mxu0 0.0
    %130 = vmatprep.subr.mxu0 0.0
    %131 = vmatpush1.msra.mxu0 0.0
    %132 = vmatprep.subr.mxu0 0.0
    %133 = vmatpush1.msra.mxu0 0.0
    %134 = vmatprep.subr.mxu0 0.0
    %135 = vmatpush1.msra.mxu0 0.0
    %136 = vmatprep.subr.mxu0 0.0
    %137 = vmatpush1.msra.mxu0 0.0
    %138 = vmatprep.subr.mxu0 0.0
    %139 = vmatpush1.msra.mxu0 0.0
    %140 = vmatprep.subr.mxu0 0.0
    %141 = vmatpush1.msra.mxu0 0.0
    %142 = vmatprep.subr.mxu0 0.0
    %143 = vmatpush1.msra.mxu0 0.0
    %144 = vmatprep.subr.mxu0 0.0
    %145 = vmatpush1.msra.mxu0 0.0
    %146 = vmatprep.subr.mxu0 0.0
    %147 = vmatpush1.msra.mxu0 0.0
    %148 = vmatprep.mubr.f32.mxu0 0.0
    %149 = vmatmul.mubr.f32.gmra.mrb[0].mxu0 %v60
    %v150 = vpop.f32.mrb[0].mxu0
    %v151 = vadd.f32 %v82, %v150
    %v152 = vpop.f32.mrb[0].mxu0
    %153 = vdwg.mxu0
    %v154 = vtanh.pop %v151
    %v155 = vld [vmem:[#allocation7] sm:$0xff]
    %v156 = vld [vmem:[#allocation7 + $0x8] sm:$0xff]
    %v157 = vld [vmem:[#allocation7 + $0x10] sm:$0xff]
    %v158 = vld [vmem:[#allocation7 + $0x18] sm:$0xff]
    %v159 = vld [vmem:[#allocation7 + $0x20] sm:$0xff]
    %v160 = vld [vmem:[#allocation7 + $0x28] sm:$0xff]
    %v161 = vld [vmem:[#allocation7 + $0x30] sm:$0xff]
    %v162 = vld [vmem:[#allocation7 + $0x38] sm:$0xff]
    %v163 = vld [vmem:[#allocation7 + $0x40] sm:$0xff]
    %v164 = vld [vmem:[#allocation7 + $0x48] sm:$0xff]
    %v165 = vld [vmem:[#allocation7 + $0x50] sm:$0xff]
    %v166 = vld [vmem:[#allocation7 + $0x58] sm:$0xff]
    %v167 = vld [vmem:[#allocation7 + $0x60] sm:$0xff]
    %v168 = vld [vmem:[#allocation7 + $0x68] sm:$0xff]
    %v169 = vld [vmem:[#allocation7 + $0x70] sm:$0xff]
    %v170 = vld [vmem:[#allocation7 + $0x78] sm:$0xff]
    %v171 = vld [vmem:[%s4] sm:$0x1]
    %v173 = vlaneseq
    %v174 = vshrl.u32 %v173, 7
    %v175 = vsub.s32 0, %v174
    %v176 = vrot.slane %v171, %v175
    %178 = vmatprep.subr.mxu0 0.0
    %179 = vmatpush1.msra.mxu0 %v155
    %180 = vmatprep.subr.mxu0 0.0
    %181 = vmatpush1.msra.mxu0 %v156
    %182 = vmatprep.subr.mxu0 0.0
    %183 = vmatpush1.msra.mxu0 %v157
    %184 = vmatprep.subr.mxu0 0.0
    %185 = vmatpush1.msra.mxu0 %v158
    %186 = vmatprep.subr.mxu0 0.0
    %187 = vmatpush1.msra.mxu0 %v159
    %188 = vmatprep.subr.mxu0 0.0
    %189 = vmatpush1.msra.mxu0 %v160
    %190 = vmatprep.subr.mxu0 0.0
    %191 = vmatpush1.msra.mxu0 %v161
    %192 = vmatprep.subr.mxu0 0.0
    %193 = vmatpush1.msra.mxu0 %v162
    %194 = vmatprep.subr.mxu0 0.0
    %195 = vmatpush1.msra.mxu0 %v163
    %196 = vmatprep.subr.mxu0 0.0
    %197 = vmatpush1.msra.mxu0 %v164
    %198 = vmatprep.subr.mxu0 0.0
    %199 = vmatpush1.msra.mxu0 %v165
    %200 = vmatprep.subr.mxu0 0.0
    %201 = vmatpush1.msra.mxu0 %v166
    %202 = vmatprep.subr.mxu0 0.0
    %203 = vmatpush1.msra.mxu0 %v167
    %204 = vmatprep.subr.mxu0 0.0
    %205 = vmatpush1.msra.mxu0 %v168
    %206 = vmatprep.subr.mxu0 0.0
    %207 = vmatpush1.msra.mxu0 %v169
    %208 = vmatprep.subr.mxu0 0.0
    %209 = vmatpush1.msra.mxu0 %v170
    %210 = vmatprep.subr.mxu0 0.0
    %211 = vmatpush1.msra.mxu0 0.0
    %212 = vmatprep.subr.mxu0 0.0
    %213 = vmatpush1.msra.mxu0 0.0
    %214 = vmatprep.subr.mxu0 0.0
    %215 = vmatpush1.msra.mxu0 0.0
    %216 = vmatprep.subr.mxu0 0.0
    %217 = vmatpush1.msra.mxu0 0.0
    %218 = vmatprep.subr.mxu0 0.0
    %219 = vmatpush1.msra.mxu0 0.0
    %220 = vmatprep.subr.mxu0 0.0
    %221 = vmatpush1.msra.mxu0 0.0
    %222 = vmatprep.subr.mxu0 0.0
    %223 = vmatpush1.msra.mxu0 0.0
    %224 = vmatprep.subr.mxu0 0.0
    %225 = vmatpush1.msra.mxu0 0.0
    %226 = vmatprep.subr.mxu0 0.0
    %227 = vmatpush1.msra.mxu0 0.0
    %228 = vmatprep.subr.mxu0 0.0
    %229 = vmatpush1.msra.mxu0 0.0
    %230 = vmatprep.subr.mxu0 0.0
    %231 = vmatpush1.msra.mxu0 0.0
    %232 = vmatprep.subr.mxu0 0.0
    %233 = vmatpush1.msra.mxu0 0.0
    %234 = vmatprep.subr.mxu0 0.0
    %235 = vmatpush1.msra.mxu0 0.0
    %236 = vmatprep.subr.mxu0 0.0
    %237 = vmatpush1.msra.mxu0 0.0
    %238 = vmatprep.subr.mxu0 0.0
    %239 = vmatpush1.msra.mxu0 0.0
    %240 = vmatprep.subr.mxu0 0.0
    %241 = vmatpush1.msra.mxu0 0.0
    %242 = vmatprep.mubr.f32.mxu0 0.0
    %243 = vmatmul.mubr.f32.gmra.mrb[0].mxu0 %v154
    %v244 = vpop.f32.mrb[0].mxu0
    %v245 = vadd.f32 %v176, %v244
    %v246 = vpop.f32.mrb[0].mxu0
    %247 = vdwg.mxu0
    %v248 = vadd.f32 %v60, %v245
    %v249 = vtanh.pop %v248
    %250 = vst [vmem:[#allocation8] sm:$0xff] %v249
    // Predicated region
    $region34: #{tpu_custom_call.1} parent=1 // pred_check
      _
    $region35: #{tpu_custom_call.1} parent=1 // pred_check_branch
      %252 = sbr.rel (0) target = $region37
    $region36: #{tpu_custom_call.1} parent=1 // pred_region
      %s254 = ssub.s32 128, 128
      %255 = vsyncadd [#allocation4], %s254
      %s257 = sshll.u32 [#allocation8], 4
      %s258 = int_to_ptr.vmem [resolvable:$true] %s257
      %260 = dma.vmem_to_hbm [thread:$0]  %s258, 128, %s5, [#allocation4]
    $region37: #{tpu_custom_call.1} parent=1 // pred_fallthru
      _
    // Predicated region
    $region38: #{tpu_custom_call.1} parent=1 // pred_check
      _
    $region39: #{tpu_custom_call.1} parent=1 // pred_check_branch
      %262 = sbr.rel (0) target = $region41
    $region40: #{tpu_custom_call.1} parent=1 // pred_region
      %263 = dma.done [#allocation4], 128
    $region41: #{tpu_custom_call.1} parent=1 // pred_fallthru
      _
    %264 = vsyncpa [#allocation3], 1
    %265 = vsyncpa [#allocation6], 1
    %266 = vsyncpa [#allocation4], 1

</llo_original>
